<compile_context>
chip_gen: v7x
topology: tpu7x:2x2x1
jax: 0.10.0
libtpu: 0.0.40
codegen_flags: <defaults>
</compile_context>

<pallas_src>
import jax
import jax.numpy as jnp
from jax.experimental import pallas as pl
from jax.experimental.pallas import tpu as pltpu


def _ffn_kernel(x_ref, w1_ref, b1_ref, w2_ref, b2_ref, o_ref, acc_ref):
    # x_ref:  (TM, d_model)        input rows (block constant across inner axis)
    # w1_ref: (d_model, TK) bf16   fc1 weight chunk
    # b1_ref: (1, TK) f32          fc1 bias chunk
    # w2_ref: (TK, d_model) bf16   fc2 weight chunk
    # b2_ref: (1, d_model) f32     fc2 bias (resident)
    # o_ref:  (TM, d_model)        output rows (written on last inner chunk)
    # acc_ref:(TM, d_model) f32    fc2 accumulator scratch
    c = pl.program_id(1)

    @pl.when(c == 0)
    def _():
        acc_ref[...] = jnp.zeros_like(acc_ref)

    # Fused fc1 + ReLU + partial fc2 over this inner chunk.
    x = x_ref[...].astype(jnp.bfloat16)
    h = jnp.dot(x, w1_ref[...], preferred_element_type=jnp.float32) + b1_ref[...]
    h = jnp.maximum(h, 0.0)  # ReLU
    # TODO(synk): dropout is identity (eval mode); training-mode dropout would use
    #             pltpu.prng_seed + pltpu.prng_random_bits to build a keep mask here.
    acc_ref[...] += jnp.dot(h.astype(jnp.bfloat16), w2_ref[...],
                            preferred_element_type=jnp.float32)

    @pl.when(c == pl.num_programs(1) - 1)
    def _():
        o_ref[...] = (acc_ref[...] + b2_ref[...]).astype(o_ref.dtype)


def _spec(shape, index_map, buffers=None):
    """BlockSpec with optional explicit pipeline buffer count (graceful fallback)."""
    if buffers is not None:
        try:
            return pl.BlockSpec(shape, index_map, pipeline_mode=pl.Buffered(buffers))
        except Exception:
            pass
    return pl.BlockSpec(shape, index_map)


def _vmem_capacity_bytes():
    try:
        cap = getattr(pltpu.get_tpu_info(), "vmem_capacity_bytes", None)
        if cap:
            return int(cap)
    except Exception:
        pass
    return 64 * 1024 * 1024  # conservative default (v7x per-TensorCore)


def _round_up(x, m):
    return (x + m - 1) // m * m


def _choose_tiles(n, d_model, inner, in_bytes, out_bytes, vmem_cap):
    """Pick (row tile tm, inner chunk tk) to fit a fraction of per-core VMEM."""
    budget = int(0.70 * vmem_cap)  # headroom for compiler scratch / vregs

    # Inner chunk candidates: full inner first (fewest steps, weights resident),
    # then 128-multiple divisors.  Exact divisibility keeps every weight chunk
    # fully in-bounds (a partial inner block would feed garbage columns into the
    # accumulation, unlike partial *row* blocks which are masked on store).
    tk_cands = [inner] + [c for c in (8192, 4096, 2048, 1024, 512, 256, 128)
                          if c < inner and inner % c == 0]

    # Row tile candidates: large tiles on 128 MiB parts (v5e/v6e) for pipeline
    # efficiency; keep <=256 on 64 MiB parts (v7x) and tile inner instead.
    if vmem_cap > 96 * 1024 * 1024:
        tm_cands = [1024, 512, 256, 128, 64, 32, 16, 8]
    else:
        tm_cands = [256, 128, 64, 32, 16, 8]
    if n < 8:
        tm_cands = [n]               # block == full dim, always legal
    else:
        cap_m = _round_up(n, 8)
        tm_cands = [t for t in tm_cands if t <= cap_m] or [8]

    def footprint(tm, tk):
        nk = inner // tk
        wbuf = 1 if nk == 1 else 2            # streamed chunks are double-buffered
        f = 2 * tm * d_model * in_bytes       # x tiles (double-buffered)
        f += 2 * tm * d_model * out_bytes     # out tiles (double-buffered)
        f += wbuf * d_model * tk * 2          # w1 chunk(s), bf16
        f += wbuf * tk * 4                    # b1 chunk(s), f32
        f += wbuf * tk * d_model * 2          # w2 chunk(s), bf16
        f += d_model * 4                      # b2 (single-buffered)
        f += tm * d_model * 4                 # acc scratch (f32)
        f += tm * d_model * 2 + tm * tk * 6   # live intermediates: x bf16, h f32+bf16
        return f

    for tm in tm_cands:
        for tk in tk_cands:
            if footprint(tm, tk) <= budget:
                return tm, tk, footprint(tm, tk)
    tm, tk = tm_cands[-1], tk_cands[-1]       # last resort: smallest tiles
    return tm, tk, footprint(tm, tk)


def feed_forward(x, w1, b1, w2, b2):
    """x: (batch, seq, d_model) -> (batch, seq, d_model). Dropout = identity (eval)."""
    batch, seq, d_model = x.shape
    inner = w1.shape[1]
    n = batch * seq

    x2d = x.reshape(n, d_model)
    # Weights used in bf16 on the MXU; cast only if the caller did not already.
    if w1.dtype != jnp.bfloat16:
        w1 = w1.astype(jnp.bfloat16)
    if w2.dtype != jnp.bfloat16:
        w2 = w2.astype(jnp.bfloat16)
    b1 = b1.reshape(1, inner).astype(jnp.float32)
    b2 = b2.reshape(1, d_model).astype(jnp.float32)

    vmem_cap = _vmem_capacity_bytes()
    in_bytes = jnp.dtype(x.dtype).itemsize
    out_bytes = in_bytes
    tm, tk, footprint = _choose_tiles(n, d_model, inner, in_bytes, out_bytes, vmem_cap)

    num_i = pl.cdiv(n, tm)      # ragged last row tile: partial block, masked store
    num_k = inner // tk
    grid = (num_i, num_k)

    # Streamed weight chunks are re-read once per row tile; resident weights once.
    w_reads = 1 if num_k == 1 else num_i
    cost = pl.CostEstimate(
        flops=2 * 2 * n * d_model * inner,
        transcendentals=0,
        bytes_accessed=(n * d_model * (in_bytes + out_bytes)
                        + w_reads * 2 * d_model * inner * 2
                        + (inner + d_model) * 4),
    )

    vmem_limit = int(min(0.9 * vmem_cap, max(32 * 1024 * 1024, 1.5 * footprint)))

    # Constant-index blocks only need a single pipeline buffer.
    wk_buf = 1 if num_k == 1 else None   # None -> default (double) buffering

    out2d = pl.pallas_call(
        _ffn_kernel,
        out_shape=jax.ShapeDtypeStruct((n, d_model), x.dtype),
        grid_spec=pltpu.PrefetchScalarGridSpec(
            num_scalar_prefetch=0,
            grid=grid,
            in_specs=[
                _spec((tm, d_model), lambda i, c: (i, 0)),           # x rows
                _spec((d_model, tk), lambda i, c: (0, c), wk_buf),   # w1 chunk
                _spec((1, tk),       lambda i, c: (0, c), wk_buf),   # b1 chunk
                _spec((tk, d_model), lambda i, c: (c, 0), wk_buf),   # w2 chunk
                _spec((1, d_model),  lambda i, c: (0, 0), 1),        # b2 resident
            ],
            out_specs=_spec((tm, d_model), lambda i, c: (i, 0)),
            scratch_shapes=[pltpu.VMEM((tm, d_model), jnp.float32)],
        ),
        compiler_params=pltpu.CompilerParams(
            dimension_semantics=("parallel", "arbitrary"),
            vmem_limit_bytes=vmem_limit,
        ),
        cost_estimate=cost,
    )(x2d, w1, b1, w2, b2)

    return out2d.reshape(batch, seq, d_model)


if __name__ == "__main__":
    # Small, lane-aligned shapes consistent with the module (d_model/inner scaled down).
    batch, seq, d_model, inner = 2, 8, 128, 256

    key = jax.random.PRNGKey(0)
    kx, kw1, kb1, kw2, kb2 = jax.random.split(key, 5)

    x = jax.random.normal(kx, (batch, seq, d_model), dtype=jnp.float32)
    # Parameters built once, weights already bf16 (cast cached at "model build" time).
    w1 = (jax.random.normal(kw1, (d_model, inner), dtype=jnp.float32)
          * (1.0 / d_model ** 0.5)).astype(jnp.bfloat16)
    b1 = jax.random.normal(kb1, (inner,), dtype=jnp.float32) * 0.01
    w2 = (jax.random.normal(kw2, (inner, d_model), dtype=jnp.float32)
          * (1.0 / inner ** 0.5)).astype(jnp.bfloat16)
    b2 = jax.random.normal(kb2, (d_model,), dtype=jnp.float32) * 0.01

    out = jax.block_until_ready(feed_forward(x, w1, b1, w2, b2))

    # Pure-JAX reference with matching bf16-matmul / f32-accumulate semantics.
    x2d = x.reshape(-1, d_model)
    h_ref = jnp.maximum(
        jnp.dot(x2d.astype(jnp.bfloat16), w1, preferred_element_type=jnp.float32)
        + b1[None, :], 0.0)
    ref = (jnp.dot(h_ref.astype(jnp.bfloat16), w2, preferred_element_type=jnp.float32)
           + b2[None, :]).reshape(batch, seq, d_model)

    assert out.shape == (batch, seq, d_model)
    assert jnp.allclose(out, ref, atol=2e-2, rtol=2e-2), "mismatch vs reference"
    print("KERNEL_OK")
</pallas_src>

<mosaic_0001>
module attributes {stable_mosaic.version = 11 : i64} {
  func.func @_ffn_kernel(%arg0: i32, %arg1: i32, %arg2: memref<16x128xf32, #tpu.memory_space<vmem>>, %arg3: memref<128x256xbf16, #tpu.memory_space<vmem>>, %arg4: memref<1x256xf32, #tpu.memory_space<vmem>>, %arg5: memref<256x128xbf16, #tpu.memory_space<vmem>>, %arg6: memref<1x128xf32, #tpu.memory_space<vmem>>, %arg7: memref<16x128xf32, #tpu.memory_space<vmem>>, %arg8: memref<16x128xf32, #tpu.memory_space<vmem>>) attributes {dimension_semantics = [#tpu.dimension_semantics<parallel>, #tpu.dimension_semantics<arbitrary>], iteration_bounds = array<i64: 1, 1>, scalar_prefetch = 0 : i64, scratch_operands = 1 : i64, tpu.core_type = #tpu.core_type<tc>, window_params = [{transform_indices = @transform_0, window_bounds = array<i64: 16, 128>}, {pipeline_mode = #tpu.pipeline_mode<synchronous>, transform_indices = @transform_1, window_bounds = array<i64: 128, 256>}, {pipeline_mode = #tpu.pipeline_mode<synchronous>, transform_indices = @transform_2, window_bounds = array<i64: 1, 256>}, {pipeline_mode = #tpu.pipeline_mode<synchronous>, transform_indices = @transform_3, window_bounds = array<i64: 256, 128>}, {pipeline_mode = #tpu.pipeline_mode<synchronous>, transform_indices = @transform_4, window_bounds = array<i64: 1, 128>}, {transform_indices = @transform_5, window_bounds = array<i64: 16, 128>}]} {
    %c0_i32 = arith.constant 0 : i32
    %0 = arith.cmpi eq, %arg1, %c0_i32 : i32
    %1 = arith.extui %0 : i1 to i32
    %c0_i32_0 = arith.constant 0 : i32
    %2 = arith.cmpi ne, %1, %c0_i32_0 : i32
    scf.if %2 {
      %cst_16 = arith.constant 0.000000e+00 : f32
      %21 = vector.broadcast %cst_16 : f32 to vector<16x128xf32>
      %c0_17 = arith.constant 0 : index
      %c0_18 = arith.constant 0 : index
      %22 = vector.load %arg8[%c0_17, %c0_18] : memref<16x128xf32, #tpu.memory_space<vmem>>, vector<16x128xf32>
      tpu.vector_store %arg8[%c0_17, %c0_18], %21 {strides = array<i32>} : memref<16x128xf32, #tpu.memory_space<vmem>>, vector<16x128xf32>,
    } else {
    }
    %c0 = arith.constant 0 : index
    %c0_1 = arith.constant 0 : index
    %3 = vector.load %arg2[%c0, %c0_1] : memref<16x128xf32, #tpu.memory_space<vmem>>, vector<16x128xf32>
    %4 = arith.truncf %3 : vector<16x128xf32> to vector<16x128xbf16>
    %c0_2 = arith.constant 0 : index
    %c0_3 = arith.constant 0 : index
    %5 = vector.load %arg3[%c0_2, %c0_3] : memref<128x256xbf16, #tpu.memory_space<vmem>>, vector<128x256xbf16>
    %cst = arith.constant dense<0.000000e+00> : vector<16x256xf32>
    %6 = tpu.matmul %4, %5, %cst {dimension_numbers = #tpu.dot_dimension_numbers<[1], [0], [0], [1], [0, 0, 1, 1], [], []>} : vector<16x128xbf16>, vector<128x256xbf16>, vector<16x256xf32> -> vector<16x256xf32>
    %c0_4 = arith.constant 0 : index
    %c0_5 = arith.constant 0 : index
    %7 = vector.load %arg4[%c0_4, %c0_5] : memref<1x256xf32, #tpu.memory_space<vmem>>, vector<1x256xf32>
    %8 = vector.broadcast %7 : vector<1x256xf32> to vector<16x256xf32>
    %9 = arith.addf %6, %8 : vector<16x256xf32>
    %cst_6 = arith.constant 0.000000e+00 : f32
    %10 = vector.broadcast %cst_6 : f32 to vector<16x256xf32>
    %11 = arith.maximumf %9, %10 : vector<16x256xf32>
    %c0_7 = arith.constant 0 : index
    %c0_8 = arith.constant 0 : index
    %12 = vector.load %arg8[%c0_7, %c0_8] : memref<16x128xf32, #tpu.memory_space<vmem>>, vector<16x128xf32>
    %13 = arith.truncf %11 : vector<16x256xf32> to vector<16x256xbf16>
    %c0_9 = arith.constant 0 : index
    %c0_10 = arith.constant 0 : index
    %14 = vector.load %arg5[%c0_9, %c0_10] : memref<256x128xbf16, #tpu.memory_space<vmem>>, vector<256x128xbf16>
    %cst_11 = arith.constant dense<0.000000e+00> : vector<16x128xf32>
    %15 = tpu.matmul %13, %14, %cst_11 {dimension_numbers = #tpu.dot_dimension_numbers<[1], [0], [0], [1], [0, 0, 1, 1], [], []>} : vector<16x256xbf16>, vector<256x128xbf16>, vector<16x128xf32> -> vector<16x128xf32>
    %16 = arith.addf %12, %15 : vector<16x128xf32>
    %c0_12 = arith.constant 0 : index
    %c0_13 = arith.constant 0 : index
    %17 = vector.load %arg8[%c0_12, %c0_13] : memref<16x128xf32, #tpu.memory_space<vmem>>, vector<16x128xf32>
    tpu.vector_store %arg8[%c0_12, %c0_13], %16 {strides = array<i32>} : memref<16x128xf32, #tpu.memory_space<vmem>>, vector<16x128xf32>,
    %c0_i32_14 = arith.constant 0 : i32
    %18 = arith.cmpi eq, %arg1, %c0_i32_14 : i32
    %19 = arith.extui %18 : i1 to i32
    %c0_i32_15 = arith.constant 0 : i32
    %20 = arith.cmpi ne, %19, %c0_i32_15 : i32
    scf.if %20 {
      %c0_16 = arith.constant 0 : index
      %c0_17 = arith.constant 0 : index
      %21 = vector.load %arg8[%c0_16, %c0_17] : memref<16x128xf32, #tpu.memory_space<vmem>>, vector<16x128xf32>
      %c0_18 = arith.constant 0 : index
      %c0_19 = arith.constant 0 : index
      %22 = vector.load %arg6[%c0_18, %c0_19] : memref<1x128xf32, #tpu.memory_space<vmem>>, vector<1x128xf32>
      %23 = vector.broadcast %22 : vector<1x128xf32> to vector<16x128xf32>
      %24 = arith.addf %21, %23 : vector<16x128xf32>
      %c0_20 = arith.constant 0 : index
      %c0_21 = arith.constant 0 : index
      %25 = vector.load %arg7[%c0_20, %c0_21] : memref<16x128xf32, #tpu.memory_space<vmem>>, vector<16x128xf32>
      tpu.vector_store %arg7[%c0_20, %c0_21], %24 {strides = array<i32>} : memref<16x128xf32, #tpu.memory_space<vmem>>, vector<16x128xf32>,
    } else {
    }
    return
  }
  func.func @transform_0(%arg0: i32, %arg1: i32) -> (i32, i32) {
    %c0_i32 = arith.constant 0 : i32
    %c0_i32_0 = arith.constant 0 : i32
    return %arg0, %c0_i32 : i32, i32
  }
  func.func @transform_1(%arg0: i32, %arg1: i32) -> (i32, i32) {
    %c0_i32 = arith.constant 0 : i32
    %c0_i32_0 = arith.constant 0 : i32
    return %c0_i32, %arg1 : i32, i32
  }
  func.func @transform_2(%arg0: i32, %arg1: i32) -> (i32, i32) {
    %c0_i32 = arith.constant 0 : i32
    %c0_i32_0 = arith.constant 0 : i32
    return %c0_i32, %arg1 : i32, i32
  }
  func.func @transform_3(%arg0: i32, %arg1: i32) -> (i32, i32) {
    %c0_i32 = arith.constant 0 : i32
    %c0_i32_0 = arith.constant 0 : i32
    return %arg1, %c0_i32 : i32, i32
  }
  func.func @transform_4(%arg0: i32, %arg1: i32) -> (i32, i32) {
    %c0_i32 = arith.constant 0 : i32
    %c0_i32_0 = arith.constant 0 : i32
    %c0_i32_1 = arith.constant 0 : i32
    return %c0_i32, %c0_i32_0 : i32, i32
  }
  func.func @transform_5(%arg0: i32, %arg1: i32) -> (i32, i32) {
    %c0_i32 = arith.constant 0 : i32
    %c0_i32_0 = arith.constant 0 : i32
    return %arg0, %c0_i32 : i32, i32
  }
}

</mosaic_0001>

<llo_original>
// kernel: tpu_custom_call.1
$region0: #{tpu_custom_call.1}
  #allocation0 [shape = 'u32[]', space=smem, size = 0x4, offset = 0x4, fixed_abs, tag = 'smem constant byte address 0x4 - core index']
  #allocation1 [shape = 'u32[144,128]{1,0:T(1,128)}', space=vmem, size = 0x12000, scoped, tag = 'internal scratch']
  #allocation2 [shape = 'f32[16,128]{1,0:T(8,128)}', space=vmem, size = 0x2000, scoped, tag = 'scratch operand']
  %s0 = inlined_call_operand.hbm [shape: f32[16,128], index: 0, kind: input, shape index: {}]
  %s1 = inlined_call_operand.hbm [shape: bf16[128,256], index: 1, kind: input, shape index: {}]
  %s2 = inlined_call_operand.vmem [shape: f32[1,256], index: 2, kind: input, shape index: {}]
  %s3 = inlined_call_operand.hbm [shape: bf16[256,128], index: 3, kind: input, shape index: {}]
  %s4 = inlined_call_operand.vmem [shape: f32[1,128], index: 4, kind: input, shape index: {}]
  %s5 = inlined_call_operand.hbm [shape: f32[16,128], index: 5, kind: output, shape index: {}]
  %s6 = sld [smem:[#allocation0]]
  $region50: #{tpu_custom_call.1} parent=0
    _
  %s8 = ssub.s32 1, %s6
  %s9 = scalar_select 0, %s8, %s6
  $region1: #{tpu_custom_call.1} parent=0
    #allocation3 [shape = 'u8[8192]{0}', space=vmem, size = 0x2000, scoped, tag = 'input window, operand 0, single buffered']
    #allocation4 [shape = 's32[1]{0}', space=sflag, size = 0x4, scoped, tag = 'scoped memory for tpu_custom_call.1']
    #allocation5 [shape = 's32[1]{0}', space=sflag, size = 0x4, scoped, tag = 'scoped memory for tpu_custom_call.1']
    #allocation6 [shape = 'u8[65536]{0}', space=vmem, size = 0x10000, scoped, tag = 'input window, operand 1, single buffered']
    #allocation7 [shape = 's32[1]{0}', space=sflag, size = 0x4, scoped, tag = 'scoped memory for tpu_custom_call.1']
    #allocation8 [shape = 'u8[65536]{0}', space=vmem, size = 0x10000, scoped, tag = 'input window, operand 3, single buffered']
    #allocation9 [shape = 'u8[8192]{0}', space=vmem, size = 0x2000, scoped, tag = 'output window, operand 0, single buffered']
    %10 = vsyncpa [#allocation4], 0
    %11 = vsyncpa [#allocation7], 0
    %12 = vsyncpa [#allocation5], 0
    // Predicated region
    $region2: #{tpu_custom_call.1} parent=1 // pred_check
      _
    $region3: #{tpu_custom_call.1} parent=1 // pred_check_branch
      %14 = sbr.rel (0) target = $region5
    $region4: #{tpu_custom_call.1} parent=1 // pred_region
      %s16 = ssub.s32 256, 256
      %17 = vsyncadd [#allocation4], %s16
      %s18 = sshll.u32 [#allocation3], 4
      %s19 = int_to_ptr.vmem [resolvable:$true] %s18
      %24 = dma.hbm_to_vmem [thread:$0]  %s0, 256, %s19, [#allocation4], 128, 128, 8
    $region5: #{tpu_custom_call.1} parent=1 // pred_fallthru
      _
    // Predicated region
    $region6: #{tpu_custom_call.1} parent=1 // pred_check
      _
    $region7: #{tpu_custom_call.1} parent=1 // pred_check_branch
      %26 = sbr.rel (0) target = $region9
    $region8: #{tpu_custom_call.1} parent=1 // pred_region
      %s28 = ssub.s32 2048, 2048
      %29 = vsyncadd [#allocation7], %s28
      %s30 = sshll.u32 [#allocation6], 4
      %s31 = int_to_ptr.vmem [resolvable:$true] %s30
      %36 = dma.hbm_to_vmem [thread:$0]  %s1, 2048, %s31, [#allocation7], 128, 128, 8
    $region9: #{tpu_custom_call.1} parent=1 // pred_fallthru
      _
    // Predicated region
    $region10: #{tpu_custom_call.1} parent=1 // pred_check
      _
    $region11: #{tpu_custom_call.1} parent=1 // pred_check_branch
      %38 = sbr.rel (0) target = $region13
    $region12: #{tpu_custom_call.1} parent=1 // pred_region
      _
    $region13: #{tpu_custom_call.1} parent=1 // pred_fallthru
      _
    // Predicated region
    $region14: #{tpu_custom_call.1} parent=1 // pred_check
      _
    $region15: #{tpu_custom_call.1} parent=1 // pred_check_branch
      %40 = sbr.rel (0) target = $region17
    $region16: #{tpu_custom_call.1} parent=1 // pred_region
      %s42 = ssub.s32 2048, 2048
      %43 = vsyncadd [#allocation7], %s42
      %s44 = sshll.u32 [#allocation8], 4
      %s45 = int_to_ptr.vmem [resolvable:$true] %s44
      %50 = dma.hbm_to_vmem [thread:$0]  %s3, 2048, %s45, [#allocation7], 64, 64, 4
    $region17: #{tpu_custom_call.1} parent=1 // pred_fallthru
      _
    // Predicated region
    $region18: #{tpu_custom_call.1} parent=1 // pred_check
      _
    $region19: #{tpu_custom_call.1} parent=1 // pred_check_branch
      %52 = sbr.rel (0) target = $region21
    $region20: #{tpu_custom_call.1} parent=1 // pred_region
      _
    $region21: #{tpu_custom_call.1} parent=1 // pred_fallthru
      _
    // Predicated region
    $region22: #{tpu_custom_call.1} parent=1 // pred_check
      _
    $region23: #{tpu_custom_call.1} parent=1 // pred_check_branch
      %54 = sbr.rel (0) target = $region25
    $region24: #{tpu_custom_call.1} parent=1 // pred_region
      %55 = dma.done [#allocation4], 256
    $region25: #{tpu_custom_call.1} parent=1 // pred_fallthru
      _
    // Predicated region
    $region26: #{tpu_custom_call.1} parent=1 // pred_check
      _
    $region27: #{tpu_custom_call.1} parent=1 // pred_check_branch
      %57 = sbr.rel (0) target = $region29
    $region28: #{tpu_custom_call.1} parent=1 // pred_region
      %58 = dma.done [#allocation7], 2048
    $region29: #{tpu_custom_call.1} parent=1 // pred_fallthru
      _
    // Predicated region
    $region30: #{tpu_custom_call.1} parent=1 // pred_check
      _
    $region31: #{tpu_custom_call.1} parent=1 // pred_check_branch
      %60 = sbr.rel (0) target = $region33
    $region32: #{tpu_custom_call.1} parent=1 // pred_region
      %61 = dma.done [#allocation7], 2048
    $region33: #{tpu_custom_call.1} parent=1 // pred_fallthru
      _
    %p63 = scmp.eq.s32.totalorder 0, 0
    // Predicated region
    $region34: #{tpu_custom_call.1} parent=1 // pred_check
      %p64 = pneg %p63
    $region35: #{tpu_custom_call.1} parent=1 // pred_check_branch
      %66 = sbr.rel (%p64) target = $region37
    $region36: #{tpu_custom_call.1} parent=1 // pred_region
      %67 = vst [vmem:[#allocation2] sm:$0xff] 0.0
      %68 = vst [vmem:[#allocation2 + $0x8] sm:$0xff] 0.0
    $region37: #{tpu_custom_call.1} parent=1 // pred_fallthru
      _
    %v69 = vld [vmem:[#allocation3] sm:$0xff]
    %v70 = vld [vmem:[#allocation3 + $0x8] sm:$0xff]
    %v71 = vpack.c.bf16 %v70, %v69
    %v72 = vld [vmem:[#allocation6] sm:$0xff]
    %v73 = vld [vmem:[#allocation6 + $0x8] sm:$0xff]
    %v74 = vld [vmem:[#allocation6 + $0x10] sm:$0xff]
    %v75 = vld [vmem:[#allocation6 + $0x18] sm:$0xff]
    %v76 = vld [vmem:[#allocation6 + $0x20] sm:$0xff]
    %v77 = vld [vmem:[#allocation6 + $0x28] sm:$0xff]
    %v78 = vld [vmem:[#allocation6 + $0x30] sm:$0xff]
    %v79 = vld [vmem:[#allocation6 + $0x38] sm:$0xff]
    %v80 = vld [vmem:[#allocation6 + $0x40] sm:$0xff]
    %v81 = vld [vmem:[#allocation6 + $0x48] sm:$0xff]
    %v82 = vld [vmem:[#allocation6 + $0x50] sm:$0xff]
    %v83 = vld [vmem:[#allocation6 + $0x58] sm:$0xff]
    %v84 = vld [vmem:[#allocation6 + $0x60] sm:$0xff]
    %v85 = vld [vmem:[#allocation6 + $0x68] sm:$0xff]
    %v86 = vld [vmem:[#allocation6 + $0x70] sm:$0xff]
    %v87 = vld [vmem:[#allocation6 + $0x78] sm:$0xff]
    %v88 = vld [vmem:[%s2] sm:$0x3]
    %v90 = vlaneseq
    %v91 = vshrl.u32 %v90, 7
    %v92 = vsub.s32 0, %v91
    %v93 = vrot.slane %v88, %v92
    %v94 = vlaneseq
    %v95 = vshrl.u32 %v94, 7
    %v96 = vsub.s32 1, %v95
    %v97 = vrot.slane %v88, %v96
    %v116 = vunpack.c.l.b16 %v72
    %v117 = vunpack.c.h.b16 %v72
    %v118 = vunpack.c.l.b16 %v73
    %v119 = vunpack.c.h.b16 %v73
    %v120 = vunpack.c.l.b16 %v74
    %v121 = vunpack.c.h.b16 %v74
    %v122 = vunpack.c.l.b16 %v75
    %v123 = vunpack.c.h.b16 %v75
    %v124 = vunpack.c.l.b16 %v76
    %v125 = vunpack.c.h.b16 %v76
    %v126 = vunpack.c.l.b16 %v77
    %v127 = vunpack.c.h.b16 %v77
    %v128 = vunpack.c.l.b16 %v78
    %v129 = vunpack.c.h.b16 %v78
    %v130 = vunpack.c.l.b16 %v79
    %v131 = vunpack.c.h.b16 %v79
    %v132 = vunpack.c.l.b16 %v80
    %v133 = vunpack.c.h.b16 %v80
    %v134 = vunpack.c.l.b16 %v81
    %v135 = vunpack.c.h.b16 %v81
    %v136 = vunpack.c.l.b16 %v82
    %v137 = vunpack.c.h.b16 %v82
    %v138 = vunpack.c.l.b16 %v83
    %v139 = vunpack.c.h.b16 %v83
    %v140 = vunpack.c.l.b16 %v84
    %v141 = vunpack.c.h.b16 %v84
    %v142 = vunpack.c.l.b16 %v85
    %v143 = vunpack.c.h.b16 %v85
    %v144 = vunpack.c.l.b16 %v86
    %v145 = vunpack.c.h.b16 %v86
    %v146 = vunpack.c.l.b16 %v87
    %v147 = vunpack.c.h.b16 %v87
    %v148 = vpack.c.b16 %v118, %v116
    %v149 = vpack.c.b16 %v119, %v117
    %v150 = vpack.c.b16 %v122, %v120
    %v151 = vpack.c.b16 %v123, %v121
    %v152 = vpack.c.b16 %v126, %v124
    %v153 = vpack.c.b16 %v127, %v125
    %v154 = vpack.c.b16 %v130, %v128
    %v155 = vpack.c.b16 %v131, %v129
    %v156 = vpack.c.b16 %v134, %v132
    %v157 = vpack.c.b16 %v135, %v133
    %v158 = vpack.c.b16 %v138, %v136
    %v159 = vpack.c.b16 %v139, %v137
    %v160 = vpack.c.b16 %v142, %v140
    %v161 = vpack.c.b16 %v143, %v141
    %v162 = vpack.c.b16 %v146, %v144
    %v163 = vpack.c.b16 %v147, %v145
    %180 = vmatprep.subr.bf16.mxu0 %v149
    %181 = vmatpush1.bf16.msra.mxu0 %v148
    %182 = vmatprep.subr.bf16.mxu0 %v151
    %183 = vmatpush1.bf16.msra.mxu0 %v150
    %184 = vmatprep.subr.bf16.mxu0 %v153
    %185 = vmatpush1.bf16.msra.mxu0 %v152
    %186 = vmatprep.subr.bf16.mxu0 %v155
    %187 = vmatpush1.bf16.msra.mxu0 %v154
    %188 = vmatprep.subr.bf16.mxu0 %v157
    %189 = vmatpush1.bf16.msra.mxu0 %v156
    %190 = vmatprep.subr.bf16.mxu0 %v159
    %191 = vmatpush1.bf16.msra.mxu0 %v158
    %192 = vmatprep.subr.bf16.mxu0 %v161
    %193 = vmatpush1.bf16.msra.mxu0 %v160
    %194 = vmatprep.subr.bf16.mxu0 %v163
    %195 = vmatpush1.bf16.msra.mxu0 %v162
    %196 = vmatprep.subr.bf16.mxu0 0
    %197 = vmatpush1.bf16.msra.mxu0 0
    %198 = vmatprep.subr.bf16.mxu0 0
    %199 = vmatpush1.bf16.msra.mxu0 0
    %200 = vmatprep.subr.bf16.mxu0 0
    %201 = vmatpush1.bf16.msra.mxu0 0
    %202 = vmatprep.subr.bf16.mxu0 0
    %203 = vmatpush1.bf16.msra.mxu0 0
    %204 = vmatprep.subr.bf16.mxu0 0
    %205 = vmatpush1.bf16.msra.mxu0 0
    %206 = vmatprep.subr.bf16.mxu0 0
    %207 = vmatpush1.bf16.msra.mxu0 0
    %208 = vmatprep.subr.bf16.mxu0 0
    %209 = vmatpush1.bf16.msra.mxu0 0
    %210 = vmatprep.subr.bf16.mxu0 0
    %211 = vmatpush1.bf16.msra.mxu0 0
    %212 = vmatprep.mubr.bf16.mxu0 0
    %213 = vmatmul.mubr.bf16.gmra.mrb[0].mxu0 %v71
    %v214 = vpop.f32.mrb[0].mxu0
    %v215 = vadd.f32 %v93, %v214
    %v216 = vpop.f32.mrb[0].mxu0
    %v217 = vadd.f32 %v97, %v216
    %v218 = vpop.f32.mrb[0].mxu0
    %v219 = vadd.f32 %v93, %v218
    %v220 = vpop.f32.mrb[0].mxu0
    %v221 = vadd.f32 %v97, %v220
    %222 = vdwg.mxu0
    %v223 = vmax.f32 %v215, 0.0
    %v224 = vmax.f32 %v217, 0.0
    %v225 = vmax.f32 %v219, 0.0
    %v226 = vmax.f32 %v221, 0.0
    %v227 = vld [vmem:[#allocation2] sm:$0xff]
    %v228 = vld [vmem:[#allocation2 + $0x8] sm:$0xff]
    %v229 = vpack.c.bf16 %v225, %v223
    %v230 = vpack.c.bf16 %v226, %v224
    %v231 = vld [vmem:[#allocation8] sm:$0xf]
    %v232 = vld [vmem:[#allocation8 + $0x4] sm:$0xf]
    %v233 = vld [vmem:[#allocation8 + $0x8] sm:$0xf]
    %v234 = vld [vmem:[#allocation8 + $0xc] sm:$0xf]
    %v235 = vld [vmem:[#allocation8 + $0x10] sm:$0xf]
    %v236 = vld [vmem:[#allocation8 + $0x14] sm:$0xf]
    %v237 = vld [vmem:[#allocation8 + $0x18] sm:$0xf]
    %v238 = vld [vmem:[#allocation8 + $0x1c] sm:$0xf]
    %v239 = vld [vmem:[#allocation8 + $0x20] sm:$0xf]
    %v240 = vld [vmem:[#allocation8 + $0x24] sm:$0xf]
    %v241 = vld [vmem:[#allocation8 + $0x28] sm:$0xf]
    %v242 = vld [vmem:[#allocation8 + $0x2c] sm:$0xf]
    %v243 = vld [vmem:[#allocation8 + $0x30] sm:$0xf]
    %v244 = vld [vmem:[#allocation8 + $0x34] sm:$0xf]
    %v245 = vld [vmem:[#allocation8 + $0x38] sm:$0xf]
    %v246 = vld [vmem:[#allocation8 + $0x3c] sm:$0xf]
    %v247 = vld [vmem:[#allocation8 + $0x40] sm:$0xf]
    %v248 = vld [vmem:[#allocation8 + $0x44] sm:$0xf]
    %v249 = vld [vmem:[#allocation8 + $0x48] sm:$0xf]
    %v250 = vld [vmem:[#allocation8 + $0x4c] sm:$0xf]
    %v251 = vld [vmem:[#allocation8 + $0x50] sm:$0xf]
    %v252 = vld [vmem:[#allocation8 + $0x54] sm:$0xf]
    %v253 = vld [vmem:[#allocation8 + $0x58] sm:$0xf]
    %v254 = vld [vmem:[#allocation8 + $0x5c] sm:$0xf]
    %v255 = vld [vmem:[#allocation8 + $0x60] sm:$0xf]
    %v256 = vld [vmem:[#allocation8 + $0x64] sm:$0xf]
    %v257 = vld [vmem:[#allocation8 + $0x68] sm:$0xf]
    %v258 = vld [vmem:[#allocation8 + $0x6c] sm:$0xf]
    %v259 = vld [vmem:[#allocation8 + $0x70] sm:$0xf]
    %v260 = vld [vmem:[#allocation8 + $0x74] sm:$0xf]
    %v261 = vld [vmem:[#allocation8 + $0x78] sm:$0xf]
    %v262 = vld [vmem:[#allocation8 + $0x7c] sm:$0xf]
    %v295 = vunpack.c.l.b16 %v231
    %v296 = vunpack.c.l.b16 %v232
    %v297 = vunpack.c.l.b16 %v233
    %v298 = vunpack.c.l.b16 %v234
    %v299 = vunpack.c.l.b16 %v235
    %v300 = vunpack.c.l.b16 %v236
    %v301 = vunpack.c.l.b16 %v237
    %v302 = vunpack.c.l.b16 %v238
    %v303 = vunpack.c.l.b16 %v239
    %v304 = vunpack.c.l.b16 %v240
    %v305 = vunpack.c.l.b16 %v241
    %v306 = vunpack.c.l.b16 %v242
    %v307 = vunpack.c.l.b16 %v243
    %v308 = vunpack.c.l.b16 %v244
    %v309 = vunpack.c.l.b16 %v245
    %v310 = vunpack.c.l.b16 %v246
    %v311 = vunpack.c.l.b16 %v247
    %v312 = vunpack.c.l.b16 %v248
    %v313 = vunpack.c.l.b16 %v249
    %v314 = vunpack.c.l.b16 %v250
    %v315 = vunpack.c.l.b16 %v251
    %v316 = vunpack.c.l.b16 %v252
    %v317 = vunpack.c.l.b16 %v253
    %v318 = vunpack.c.l.b16 %v254
    %v319 = vunpack.c.l.b16 %v255
    %v320 = vunpack.c.l.b16 %v256
    %v321 = vunpack.c.l.b16 %v257
    %v322 = vunpack.c.l.b16 %v258
    %v323 = vunpack.c.l.b16 %v259
    %v324 = vunpack.c.l.b16 %v260
    %v325 = vunpack.c.l.b16 %v261
    %v326 = vunpack.c.l.b16 %v262
    %v327 = vpack.c.b16 %v296, %v295
    %v328 = vpack.c.b16 %v298, %v297
    %v329 = vpack.c.b16 %v300, %v299
    %v330 = vpack.c.b16 %v302, %v301
    %v331 = vpack.c.b16 %v304, %v303
    %v332 = vpack.c.b16 %v306, %v305
    %v333 = vpack.c.b16 %v308, %v307
    %v334 = vpack.c.b16 %v310, %v309
    %v335 = vpack.c.b16 %v312, %v311
    %v336 = vpack.c.b16 %v314, %v313
    %v337 = vpack.c.b16 %v316, %v315
    %v338 = vpack.c.b16 %v318, %v317
    %v339 = vpack.c.b16 %v320, %v319
    %v340 = vpack.c.b16 %v322, %v321
    %v341 = vpack.c.b16 %v324, %v323
    %v342 = vpack.c.b16 %v326, %v325
    %359 = vmatprep.subr.bf16.mxu0 0
    %360 = vmatpush1.bf16.msra.mxu0 %v327
    %361 = vmatprep.subr.bf16.mxu0 0
    %362 = vmatpush1.bf16.msra.mxu0 %v328
    %363 = vmatprep.subr.bf16.mxu0 0
    %364 = vmatpush1.bf16.msra.mxu0 %v329
    %365 = vmatprep.subr.bf16.mxu0 0
    %366 = vmatpush1.bf16.msra.mxu0 %v330
    %367 = vmatprep.subr.bf16.mxu0 0
    %368 = vmatpush1.bf16.msra.mxu0 %v331
    %369 = vmatprep.subr.bf16.mxu0 0
    %370 = vmatpush1.bf16.msra.mxu0 %v332
    %371 = vmatprep.subr.bf16.mxu0 0
    %372 = vmatpush1.bf16.msra.mxu0 %v333
    %373 = vmatprep.subr.bf16.mxu0 0
    %374 = vmatpush1.bf16.msra.mxu0 %v334
    %375 = vmatprep.subr.bf16.mxu0 0
    %376 = vmatpush1.bf16.msra.mxu0 %v335
    %377 = vmatprep.subr.bf16.mxu0 0
    %378 = vmatpush1.bf16.msra.mxu0 %v336
    %379 = vmatprep.subr.bf16.mxu0 0
    %380 = vmatpush1.bf16.msra.mxu0 %v337
    %381 = vmatprep.subr.bf16.mxu0 0
    %382 = vmatpush1.bf16.msra.mxu0 %v338
    %383 = vmatprep.subr.bf16.mxu0 0
    %384 = vmatpush1.bf16.msra.mxu0 %v339
    %385 = vmatprep.subr.bf16.mxu0 0
    %386 = vmatpush1.bf16.msra.mxu0 %v340
    %387 = vmatprep.subr.bf16.mxu0 0
    %388 = vmatpush1.bf16.msra.mxu0 %v341
    %389 = vmatprep.subr.bf16.mxu0 0
    %390 = vmatpush1.bf16.msra.mxu0 %v342
    %391 = vmatprep.mubr.bf16.mxu0 %v230
    %392 = vmatmul.mubr.bf16.gmra.mrb[0].mxu0 %v229
    %v393 = vpop.f32.mrb[0].mxu0
    %v394 = vadd.f32 0.0, %v393
    %v395 = vpop.f32.mrb[0].mxu0
    %v396 = vpop.f32.mrb[0].mxu0
    %v397 = vadd.f32 0.0, %v396
    %v398 = vpop.f32.mrb[0].mxu0
    %399 = vdwg.mxu0
    %v400 = vadd.f32 %v227, %v394
    %v401 = vadd.f32 %v228, %v397
    %402 = vst [vmem:[#allocation2] sm:$0xff] %v400
    %403 = vst [vmem:[#allocation2 + $0x8] sm:$0xff] %v401
    // Predicated region
    $region38: #{tpu_custom_call.1} parent=1 // pred_check
      %p404 = pneg %p63
    $region39: #{tpu_custom_call.1} parent=1 // pred_check_branch
      %406 = sbr.rel (%p404) target = $region41
    $region40: #{tpu_custom_call.1} parent=1 // pred_region
      %v407 = vld [vmem:[#allocation2] sm:$0xff]
      %v408 = vld [vmem:[#allocation2 + $0x8] sm:$0xff]
      %v409 = vld [vmem:[%s4] sm:$0x1]
      %v411 = vlaneseq
      %v412 = vshrl.u32 %v411, 7
      %v413 = vsub.s32 0, %v412
      %v414 = vrot.slane %v409, %v413
      %v416 = vadd.f32 %v407, %v414
      %v417 = vadd.f32 %v408, %v414
      %418 = vst [vmem:[#allocation9] sm:$0xff] %v416
      %419 = vst [vmem:[#allocation9 + $0x8] sm:$0xff] %v417
    $region41: #{tpu_custom_call.1} parent=1 // pred_fallthru
      _
    // Predicated region
    $region42: #{tpu_custom_call.1} parent=1 // pred_check
      _
    $region43: #{tpu_custom_call.1} parent=1 // pred_check_branch
      %421 = sbr.rel (0) target = $region45
    $region44: #{tpu_custom_call.1} parent=1 // pred_region
      %s423 = ssub.s32 256, 256
      %424 = vsyncadd [#allocation5], %s423
      %s425 = sshll.u32 [#allocation9], 4
      %s426 = int_to_ptr.vmem [resolvable:$true] %s425
      %431 = dma.vmem_to_hbm [thread:$0]  %s426, 256, %s5, [#allocation5], 128, 128, 8
    $region45: #{tpu_custom_call.1} parent=1 // pred_fallthru
      _
    // Predicated region
    $region46: #{tpu_custom_call.1} parent=1 // pred_check
      _
    $region47: #{tpu_custom_call.1} parent=1 // pred_check_branch
      %433 = sbr.rel (0) target = $region49
    $region48: #{tpu_custom_call.1} parent=1 // pred_region
      %434 = dma.done [#allocation5], 256
    $region49: #{tpu_custom_call.1} parent=1 // pred_fallthru
      _
    %435 = vsyncpa [#allocation4], 1
    %436 = vsyncpa [#allocation7], 1
    %437 = vsyncpa [#allocation5], 1

</llo_original>
